<compile_context>
chip_gen: v7x
topology: tpu7x:2x2x1
jax: 0.10.0
libtpu: 0.0.40
codegen_flags: <defaults>
</compile_context>

<pallas_src>
import jax
import jax.numpy as jnp
from jax.experimental import pallas as pl
from jax.experimental.pallas import tpu as pltpu

_LANE = 128


def _round_up(x, m):
    return (x + m - 1) // m * m


def _make_kernel(smem_bias):
    def kernel(x_ref, w_ref, b_ref, o_ref):
        # x_ref: (TB, D)   w_ref: (D, O)   o_ref: (TB, O)
        z = jnp.dot(x_ref[...], w_ref[...], preferred_element_type=jnp.float32)
        if smem_bias:
            z = z + b_ref[0]          # scalar bias from SMEM (O == 1)
        else:
            z = z + b_ref[...]        # (1, O) row broadcasts over the batch
        o_ref[...] = jax.nn.sigmoid(z).astype(o_ref.dtype)

    return kernel


def logistic_regression(x, weight, bias, *, block_rows=None,
                        target_tile_bytes=2 << 20):
    """sigmoid(x @ weight.T + bias) — matches nn.Linear(D, O) + nn.Sigmoid.

    x:      (B, D)
    weight: (O, D)  (PyTorch nn.Linear layout, not pre-transposed)
    bias:   (O,)
    returns (B, O) in x.dtype
    """
    B, D = x.shape
    O, D2 = weight.shape
    assert D == D2, "feature dims of x and weight must match"
    out_dtype = x.dtype
    itemsize = jnp.dtype(x.dtype).itemsize

    # One-time transpose of the tiny (O, D) weight so the kernel runs the
    # canonical (TB, D) @ (D, O) MXU contraction (no in-kernel transpose of
    # the streamed x tiles). Negligible cost: weight << x.
    w_t = weight.T.astype(x.dtype)                        # (D, O)

    # ---- batch tile: ~target_tile_bytes of x VMEM footprint per grid step.
    d_lanes = _round_up(max(D, _LANE), _LANE)             # lane-padded feature dim
    row_bytes = d_lanes * itemsize
    if block_rows is not None:
        TB = block_rows
    else:
        TB = max(_LANE, (target_tile_bytes // row_bytes) // _LANE * _LANE)
    if TB >= B:
        TB = B                                            # single full block
    grid = (pl.cdiv(B, TB),)                              # trailing partial block OK

    # ---- bias placement (SMEM scalar for the O == 1 logistic case).
    smem_bias = (O == 1)
    if smem_bias:
        b_in = bias.reshape(1).astype(jnp.float32)
        b_spec = pl.BlockSpec(memory_space=pltpu.MemorySpace.SMEM)
    else:
        b_in = bias.reshape(1, O).astype(jnp.float32)
        b_spec = pl.BlockSpec((1, O), lambda i: (0, 0))

    # ---- VMEM budget estimate (double-buffered x/out + resident weight),
    # kept under v7x's 64 MiB physical VMEM and raised above the 16/32 MiB
    # scoped defaults on v5e/v6e when needed.
    o_lanes = _round_up(max(O, _LANE), _LANE)
    x_tile_bytes = _round_up(TB, 8) * d_lanes * itemsize
    out_tile_bytes = _round_up(TB, 8) * o_lanes * jnp.dtype(out_dtype).itemsize
    w_bytes = _round_up(D, 8) * o_lanes * itemsize
    vmem_need = 2 * x_tile_bytes + 2 * out_tile_bytes + 2 * w_bytes + (2 << 20)
    vmem_limit = int(min(max(vmem_need, 32 << 20), 48 << 20))
    # TODO(synk): very large D*O weights (tens of MiB) need a K-tiled grid axis
    # with an f32 accumulator + single-buffered weight; not implemented here.

    cost = pl.CostEstimate(
        flops=2 * B * D * O,
        transcendentals=B * O,
        bytes_accessed=(B * D + D * O) * itemsize
        + O * 4
        + B * O * jnp.dtype(out_dtype).itemsize,
    )

    return pl.pallas_call(
        _make_kernel(smem_bias),
        out_shape=jax.ShapeDtypeStruct((B, O), out_dtype),
        grid_spec=pltpu.PrefetchScalarGridSpec(
            num_scalar_prefetch=0,
            grid=grid,
            in_specs=[
                pl.BlockSpec((TB, D), lambda i: (i, 0)),   # streamed batch tile
                pl.BlockSpec((D, O), lambda i: (0, 0)),    # VMEM-resident weight
                b_spec,                                    # bias
            ],
            out_specs=pl.BlockSpec((TB, O), lambda i: (i, 0)),
        ),
        compiler_params=pltpu.CompilerParams(
            dimension_semantics=("parallel",),   # batch tiles shard on v7x 2-TC
            vmem_limit_bytes=vmem_limit,
        ),
        cost_estimate=cost,
    )(x, w_t, b_in)


if __name__ == "__main__":
    # Bag-of-words-like features for 4 "sentences" over a 16-token vocab,
    # matching the CountVectorizer output shape of the reference script.
    # TODO(synk): CountVectorizer text preprocessing has no Pallas equivalent;
    # token-count features are synthesized in-script instead.
    B, D, O = 4, 16, 1

    key = jax.random.PRNGKey(0)
    kx, kw, kb, kx2 = jax.random.split(key, 4)

    x = jax.random.randint(kx, (B, D), 0, 3).astype(jnp.float32)     # token counts
    weight = jax.random.normal(kw, (O, D), dtype=jnp.float32) / jnp.sqrt(D)
    bias = jax.random.normal(kb, (O,), dtype=jnp.float32) * 0.01

    # Small-batch path (single full block).
    out = jax.block_until_ready(logistic_regression(x, weight, bias))
    ref = jax.nn.sigmoid(x @ weight.T + bias)
    assert out.shape == (B, O)
    assert jnp.allclose(out, ref, atol=1e-5, rtol=1e-5)

    # Tiled path with a trailing partial block (no wrapper-side padding).
    B2 = 300
    x2 = jax.random.randint(kx2, (B2, D), 0, 3).astype(jnp.float32)
    out2 = jax.block_until_ready(
        logistic_regression(x2, weight, bias, block_rows=128))
    ref2 = jax.nn.sigmoid(x2 @ weight.T + bias)
    assert out2.shape == (B2, O)
    assert jnp.allclose(out2, ref2, atol=1e-5, rtol=1e-5)

    print("KERNEL_OK")
</pallas_src>

<mosaic_0001>
module attributes {stable_mosaic.version = 11 : i64} {
  func.func @kernel(%arg0: i32, %arg1: memref<4x16xf32, #tpu.memory_space<vmem>>, %arg2: memref<16x1xf32, #tpu.memory_space<vmem>>, %arg3: memref<1xf32, #tpu.memory_space<smem>>, %arg4: memref<4x1xf32, #tpu.memory_space<vmem>>) attributes {dimension_semantics = [#tpu.dimension_semantics<parallel>], iteration_bounds = array<i64: 1>, scalar_prefetch = 0 : i64, scratch_operands = 0 : i64, tpu.core_type = #tpu.core_type<tc>, window_params = [{transform_indices = @transform_0, window_bounds = array<i64: 4, 16>}, {pipeline_mode = #tpu.pipeline_mode<synchronous>, transform_indices = @transform_1, window_bounds = array<i64: 16, 1>}, {transform_indices = @transform_2, window_bounds = array<i64: 1>}, {transform_indices = @transform_3, window_bounds = array<i64: 4, 1>}]} {
    %c0 = arith.constant 0 : index
    %c0_0 = arith.constant 0 : index
    %0 = vector.load %arg1[%c0, %c0_0] : memref<4x16xf32, #tpu.memory_space<vmem>>, vector<4x16xf32>
    %c0_1 = arith.constant 0 : index
    %c0_2 = arith.constant 0 : index
    %1 = vector.load %arg2[%c0_1, %c0_2] : memref<16x1xf32, #tpu.memory_space<vmem>>, vector<16x1xf32>
    %cst = arith.constant dense<0.000000e+00> : vector<4x1xf32>
    %2 = tpu.matmul %0, %1, %cst {dimension_numbers = #tpu.dot_dimension_numbers<[1], [0], [0], [1], [0, 0, 1, 1], [], []>} : vector<4x16xf32>, vector<16x1xf32>, vector<4x1xf32> -> vector<4x1xf32>
    %c0_3 = arith.constant 0 : index
    %3 = memref.load %arg3[%c0_3] : memref<1xf32, #tpu.memory_space<smem>>
    %4 = vector.broadcast %3 : f32 to vector<4x1xf32>
    %5 = arith.addf %2, %4 : vector<4x1xf32>
    %6 = arith.negf %5 : vector<4x1xf32>
    %7 = math.exp %6 : vector<4x1xf32>
    %cst_4 = arith.constant 1.000000e+00 : f32
    %8 = vector.broadcast %cst_4 : f32 to vector<4x1xf32>
    %9 = arith.addf %8, %7 : vector<4x1xf32>
    %10 = arith.divf %8, %9 : vector<4x1xf32>
    %c0_5 = arith.constant 0 : index
    %c0_6 = arith.constant 0 : index
    %11 = vector.load %arg4[%c0_5, %c0_6] : memref<4x1xf32, #tpu.memory_space<vmem>>, vector<4x1xf32>
    tpu.vector_store %arg4[%c0_5, %c0_6], %10 {strides = array<i32>} : memref<4x1xf32, #tpu.memory_space<vmem>>, vector<4x1xf32>,
    return
  }
  func.func @transform_0(%arg0: i32) -> (i32, i32) {
    %c0_i32 = arith.constant 0 : i32
    %c0_i32_0 = arith.constant 0 : i32
    return %arg0, %c0_i32 : i32, i32
  }
  func.func @transform_1(%arg0: i32) -> (i32, i32) {
    %c0_i32 = arith.constant 0 : i32
    %c0_i32_0 = arith.constant 0 : i32
    %c0_i32_1 = arith.constant 0 : i32
    return %c0_i32, %c0_i32_0 : i32, i32
  }
  func.func @transform_2(%arg0: i32) -> i32 {
    %c0_i32 = arith.constant 0 : i32
    %c0_i32_0 = arith.constant 0 : i32
    return %c0_i32 : i32
  }
  func.func @transform_3(%arg0: i32) -> (i32, i32) {
    %c0_i32 = arith.constant 0 : i32
    %c0_i32_0 = arith.constant 0 : i32
    return %arg0, %c0_i32 : i32, i32
  }
}

</mosaic_0001>

<llo_original>
// kernel: tpu_custom_call.1
$region0: #{tpu_custom_call.1}
  #allocation0 [shape = 'u32[]', space=smem, size = 0x4, offset = 0x4, fixed_abs, tag = 'smem constant byte address 0x4 - core index']
  #allocation1 [shape = 'u32[144,128]{1,0:T(1,128)}', space=vmem, size = 0x12000, scoped, tag = 'internal scratch']
  #allocation2 [shape = 'f32[1]{0:T(128)S(6)}', space=smem, size = 0x200, scoped, tag = 'scoped memory for tpu_custom_call.1']
  %s0 = inlined_call_operand.vmem [shape: f32[4,16], index: 0, kind: input, shape index: {}]
  %s1 = inlined_call_operand.vmem [shape: f32[16,1], index: 1, kind: input, shape index: {}]
  %s2 = inlined_call_operand.<no memory space> [shape: f32[1], index: 2, kind: input, shape index: {}]
  %s3 = inlined_call_operand.vmem [shape: f32[4,1], index: 3, kind: output, shape index: {}]
  %s4 = sld [smem:[#allocation0]]
  $region22: #{tpu_custom_call.1} parent=0
    _
  %s6 = ssub.s32 1, %s4
  %s7 = scalar_select 0, %s6, %s4
  %8 = sst [smem:[#allocation2]] %s2
  // Predicated region
  $region2: #{tpu_custom_call.1} parent=0 // pred_check
    _
  $region3: #{tpu_custom_call.1} parent=0 // pred_check_branch
    %10 = sbr.rel (0) target = $region5
  $region4: #{tpu_custom_call.1} parent=0 // pred_region
    _
  $region5: #{tpu_custom_call.1} parent=0 // pred_fallthru
    _
  // Predicated region
  $region6: #{tpu_custom_call.1} parent=0 // pred_check
    _
  $region7: #{tpu_custom_call.1} parent=0 // pred_check_branch
    %12 = sbr.rel (0) target = $region9
  $region8: #{tpu_custom_call.1} parent=0 // pred_region
    _
  $region9: #{tpu_custom_call.1} parent=0 // pred_fallthru
    _
  // Predicated region
  $region10: #{tpu_custom_call.1} parent=0 // pred_check
    _
  $region11: #{tpu_custom_call.1} parent=0 // pred_check_branch
    %14 = sbr.rel (0) target = $region13
  $region12: #{tpu_custom_call.1} parent=0 // pred_region
    _
  $region13: #{tpu_custom_call.1} parent=0 // pred_fallthru
    _
  %v15 = vld [vmem:[%s0] sm:$0xf]
  %v16 = vld [vmem:[%s1] sm:$0xff]
  %v17 = vld [vmem:[%s1 + $0x8] sm:$0xff]
  %s18 = sld [smem:[#allocation2]]
  %v19 = vstv %s18
  %vm20 = vcmask 130048
  %v22 = vsel %vm20, %v15, 0
  %24 = vmatprep.subr.mxu0 0.0
  %25 = vmatpush1.msra.mxu0 %v16
  %26 = vmatprep.subr.mxu0 0.0
  %27 = vmatpush1.msra.mxu0 %v17
  %28 = vmatprep.subr.mxu0 0.0
  %29 = vmatpush1.msra.mxu0 0.0
  %30 = vmatprep.subr.mxu0 0.0
  %31 = vmatpush1.msra.mxu0 0.0
  %32 = vmatprep.subr.mxu0 0.0
  %33 = vmatpush1.msra.mxu0 0.0
  %34 = vmatprep.subr.mxu0 0.0
  %35 = vmatpush1.msra.mxu0 0.0
  %36 = vmatprep.subr.mxu0 0.0
  %37 = vmatpush1.msra.mxu0 0.0
  %38 = vmatprep.subr.mxu0 0.0
  %39 = vmatpush1.msra.mxu0 0.0
  %40 = vmatprep.subr.mxu0 0.0
  %41 = vmatpush1.msra.mxu0 0.0
  %42 = vmatprep.subr.mxu0 0.0
  %43 = vmatpush1.msra.mxu0 0.0
  %44 = vmatprep.subr.mxu0 0.0
  %45 = vmatpush1.msra.mxu0 0.0
  %46 = vmatprep.subr.mxu0 0.0
  %47 = vmatpush1.msra.mxu0 0.0
  %48 = vmatprep.subr.mxu0 0.0
  %49 = vmatpush1.msra.mxu0 0.0
  %50 = vmatprep.subr.mxu0 0.0
  %51 = vmatpush1.msra.mxu0 0.0
  %52 = vmatprep.subr.mxu0 0.0
  %53 = vmatpush1.msra.mxu0 0.0
  %54 = vmatprep.subr.mxu0 0.0
  %55 = vmatpush1.msra.mxu0 0.0
  %56 = vmatprep.subr.mxu0 0.0
  %57 = vmatpush1.msra.mxu0 0.0
  %58 = vmatprep.subr.mxu0 0.0
  %59 = vmatpush1.msra.mxu0 0.0
  %60 = vmatprep.subr.mxu0 0.0
  %61 = vmatpush1.msra.mxu0 0.0
  %62 = vmatprep.subr.mxu0 0.0
  %63 = vmatpush1.msra.mxu0 0.0
  %64 = vmatprep.subr.mxu0 0.0
  %65 = vmatpush1.msra.mxu0 0.0
  %66 = vmatprep.subr.mxu0 0.0
  %67 = vmatpush1.msra.mxu0 0.0
  %68 = vmatprep.subr.mxu0 0.0
  %69 = vmatpush1.msra.mxu0 0.0
  %70 = vmatprep.subr.mxu0 0.0
  %71 = vmatpush1.msra.mxu0 0.0
  %72 = vmatprep.subr.mxu0 0.0
  %73 = vmatpush1.msra.mxu0 0.0
  %74 = vmatprep.subr.mxu0 0.0
  %75 = vmatpush1.msra.mxu0 0.0
  %76 = vmatprep.subr.mxu0 0.0
  %77 = vmatpush1.msra.mxu0 0.0
  %78 = vmatprep.subr.mxu0 0.0
  %79 = vmatpush1.msra.mxu0 0.0
  %80 = vmatprep.subr.mxu0 0.0
  %81 = vmatpush1.msra.mxu0 0.0
  %82 = vmatprep.subr.mxu0 0.0
  %83 = vmatpush1.msra.mxu0 0.0
  %84 = vmatprep.subr.mxu0 0.0
  %85 = vmatpush1.msra.mxu0 0.0
  %86 = vmatprep.subr.mxu0 0.0
  %87 = vmatpush1.msra.mxu0 0.0
  %88 = vmatprep.mubr.f32.mxu0 0.0
  %89 = vmatmul.mubr.f32.gmra.mrb[0].mxu0 %v22
  %v90 = vpop.f32.mrb[0].mxu0
  %v91 = vadd.f32 %v19, %v90
  %v92 = vpop.f32.mrb[0].mxu0
  %93 = vdwg.mxu0
  %v94 = vxor.u32 %v91, 2147483648
  %v95 = vmul.f32 %v94, 1.442695
  %v96 = vpow.pop %v95
  %v97 = vadd.f32 %v96, 1.0
  %v98 = vrcp.pop %v97
  %v99 = vmul.f32 1.0, %v98
  %vm100 = vcmask 3072
  %101 = vst.msk [vmem:[%s3] sm:$0xf] %vm100, %v99
  // Predicated region
  $region14: #{tpu_custom_call.1} parent=0 // pred_check
    _
  $region15: #{tpu_custom_call.1} parent=0 // pred_check_branch
    %103 = sbr.rel (0) target = $region17
  $region16: #{tpu_custom_call.1} parent=0 // pred_region
    _
  $region17: #{tpu_custom_call.1} parent=0 // pred_fallthru
    _
  // Predicated region
  $region18: #{tpu_custom_call.1} parent=0 // pred_check
    _
  $region19: #{tpu_custom_call.1} parent=0 // pred_check_branch
    %105 = sbr.rel (0) target = $region21
  $region20: #{tpu_custom_call.1} parent=0 // pred_region
    _
  $region21: #{tpu_custom_call.1} parent=0 // pred_fallthru
    _

</llo_original>
